<compile_context>
chip_gen: v5e
topology: v5e:2x2
jax: 0.10.0
libtpu: 0.0.40
codegen_flags: <defaults>
</compile_context>

<pallas_src>
import functools

import jax
import jax.numpy as jnp
from jax.experimental import pallas as pl
from jax.experimental.pallas import tpu as pltpu

LANE = 128
SUBLANE = 8
CHUNK_ROWS = 512          # per-chunk working set: 512*128*4B = 256 KiB per value


def _num_tensorcores():
    """Best-effort TensorCores-per-device count; 1 is always safe/correct."""
    try:
        info = pltpu.get_tpu_info()
    except Exception:
        return 1
    for name in ("num_cores", "core_count", "num_tensorcores",
                 "tensor_cores_per_chip", "cores_per_chip", "num_tensor_cores"):
        v = getattr(info, name, None)
        try:
            v = int(v)
        except (TypeError, ValueError):
            continue
        if v >= 1:
            return v
    return 1


NCORES = max(1, min(2, _num_tensorcores()))
# Bigger tiles on 2-TC chips (v7x) to amortize the ~0.35us per-grid-step cost;
# keep 4096 rows (2 MiB f32 / input buffer) on v5e/v6e.
DESIRED_TILE_ROWS = 8192 if NCORES >= 2 else 4096


def _focal_dice_bce_kernel(x_ref, t_ref, out_ref, *, alpha, gamma, total_rows,
                           tile_rows, tiles_per_core, n_full_tiles,
                           n_full_chunks, rem_rows, needs_mask):
    c = pl.program_id(0)      # "parallel" core axis (extent 1 on single-TC chips)
    k = pl.program_id(1)      # sequential reduction axis

    @pl.when(k == 0)
    def _init():
        out_ref[...] = jnp.zeros_like(out_ref)

    g = c * tiles_per_core + k    # global tile index (may overshoot; index_map clamps)

    def accum_chunk(row_off, nrows, masked):
        x = x_ref[pl.ds(row_off, nrows), :].astype(jnp.float32)
        t = t_ref[pl.ds(row_off, nrows), :].astype(jnp.float32)

        # Binary targets (required by the module's alpha_lst[targets.long()]
        # indexing) => exp(-BCE) == where(t==1, x, 1-x).  One log per element;
        # the -100 clamp matches F.binary_cross_entropy exactly.
        is_pos = t == 1.0
        p = jnp.where(is_pos, x, 1.0 - x)
        bce = -jnp.maximum(jnp.log(p), -100.0)

        one_m_p = 1.0 - p
        gf = float(gamma)
        gi = int(gf)
        if gf == gi and 1 <= gi <= 8:
            mod = one_m_p
            for _ in range(gi - 1):          # gamma==2 -> a single VPU multiply
                mod = mod * one_m_p
        elif gf == 0.0:
            mod = jnp.ones_like(one_m_p)
        else:
            mod = jnp.power(one_m_p, gf)     # TODO(synk): non-integer gamma falls back to exp/log pow

        alpha_v = jnp.where(is_pos, jnp.float32(alpha), jnp.float32(1.0 - alpha))
        focal = alpha_v * mod * bce

        v_inter = x * t
        v_sum = x + t

        if masked:
            # Rows at/after `total_rows` are partial-edge-block garbage or
            # clamped overshoot duplicates: select them to exactly 0 so they
            # contribute nothing (NaN/Inf in dead lanes is discarded by the
            # select, never multiplied in).
            row0 = g * tile_rows + row_off
            row_ids = row0 + jax.lax.broadcasted_iota(jnp.int32, (nrows, LANE), 0)
            valid = row_ids < total_rows
            zero = jnp.zeros((), jnp.float32)
            v_inter = jnp.where(valid, v_inter, zero)
            v_sum = jnp.where(valid, v_sum, zero)
            focal = jnp.where(valid, focal, zero)

        def fold(v):   # per-(sublane, lane) partial sums: pure VPU adds
            return jnp.sum(v.reshape(nrows // SUBLANE, SUBLANE, LANE), axis=0)

        out_ref[0, 0] += fold(v_inter)   # intersection
        out_ref[0, 1] += fold(v_sum)     # sum(inputs) + sum(targets)
        out_ref[0, 2] += fold(focal)     # focal-loss sum

    def run_tile(masked):
        if n_full_chunks > 0:
            def body(i, carry):
                accum_chunk(pl.multiple_of(i * CHUNK_ROWS, CHUNK_ROWS),
                            CHUNK_ROWS, masked)
                return carry
            jax.lax.fori_loop(0, n_full_chunks, body, 0, unroll=True)
        if rem_rows > 0:
            accum_chunk(n_full_chunks * CHUNK_ROWS, rem_rows, masked)

    if needs_mask:
        @pl.when(g < n_full_tiles)
        def _full_tiles():
            run_tile(False)

        @pl.when(g >= n_full_tiles)
        def _tail_tiles():
            run_tile(True)
    else:
        run_tile(False)


def _elementwise_stats(x, t, alpha, gamma):
    """(intersection, sum(x)+sum(t), focal-sum) in plain JAX — used only for the
    tiny unaligned tail so the big arrays are never padded/copied."""
    x = x.astype(jnp.float32)
    t = t.astype(jnp.float32)
    is_pos = t == 1.0
    p = jnp.where(is_pos, x, 1.0 - x)
    bce = -jnp.maximum(jnp.log(p), -100.0)
    a = jnp.where(is_pos, jnp.float32(alpha), jnp.float32(1.0 - alpha))
    focal = a * (1.0 - p) ** gamma * bce
    return jnp.sum(x * t), jnp.sum(x + t), jnp.sum(focal)


def _row_multiple(dtype):
    # Sub-4-byte dtypes pack along sublanes: bf16 needs 16-row, int8/bool 32-row
    # aligned blocks.
    itemsize = int(jnp.dtype(dtype).itemsize)
    return SUBLANE * max(1, 4 // max(1, itemsize))


def focal_dice_bce_loss(inputs, targets, *, dice_weight, alpha=0.25,
                        gamma=2.0, smooth=1e-5):
    x = inputs.reshape(-1)
    t = targets.reshape(-1)
    n = x.shape[0]

    align_rows = max(_row_multiple(x.dtype), _row_multiple(t.dtype))
    align_elems = align_rows * LANE
    body_elems = (n // align_elems) * align_elems

    if body_elems == 0:
        inter, sum_xt, focal_sum = _elementwise_stats(x, t, alpha, gamma)
    else:
        # Zero-copy when already aligned; otherwise feed the aligned prefix and
        # reduce the (< align_elems) tail in plain JAX instead of padding the
        # whole array through HBM.
        # TODO(synk): a fully copy-free ragged body would need a manual-DMA
        # (memory_space=pl.ANY) variant over the flat 1-D arrays.
        xb = (x if body_elems == n else x[:body_elems]).reshape(-1, LANE)
        tb = (t if body_elems == n else t[:body_elems]).reshape(-1, LANE)
        rows = body_elems // LANE

        tile_rows = min(DESIRED_TILE_ROWS, rows)
        tiles_total = -(-rows // tile_rows)
        tiles_per_core = -(-tiles_total // NCORES)
        n_full_tiles = rows // tile_rows
        needs_mask = (tiles_per_core * NCORES != tiles_total) or (rows % tile_rows != 0)
        last_block = tiles_total - 1
        n_full_chunks = tile_rows // CHUNK_ROWS
        rem_rows = tile_rows % CHUNK_ROWS

        def in_map(c, k):
            # Clamp so reads always stay in bounds; logically out-of-range
            # (overshoot) tiles are zero-masked inside the kernel.
            return (jnp.minimum(c * tiles_per_core + k, last_block), 0)

        kernel = functools.partial(
            _focal_dice_bce_kernel,
            alpha=float(alpha), gamma=float(gamma), total_rows=int(rows),
            tile_rows=int(tile_rows), tiles_per_core=int(tiles_per_core),
            n_full_tiles=int(n_full_tiles), n_full_chunks=int(n_full_chunks),
            rem_rows=int(rem_rows), needs_mask=bool(needs_mask))

        # Explicit VMEM budget: double-buffered I/O tiles + headroom for the
        # chunked elementwise temporaries; capped at v7x's 64 MiB per core.
        io_bytes = 2 * tile_rows * LANE * (xb.dtype.itemsize + tb.dtype.itemsize)
        vmem_limit = int(min(64 * 1024 * 1024,
                             max(32 * 1024 * 1024, io_bytes + 16 * 1024 * 1024)))

        partials = pl.pallas_call(
            kernel,
            out_shape=jax.ShapeDtypeStruct((NCORES, 3, SUBLANE, LANE), jnp.float32),
            grid_spec=pltpu.PrefetchScalarGridSpec(
                num_scalar_prefetch=0,
                grid=(NCORES, tiles_per_core),
                in_specs=[
                    pl.BlockSpec((tile_rows, LANE), in_map),
                    pl.BlockSpec((tile_rows, LANE), in_map),
                ],
                out_specs=pl.BlockSpec((1, 3, SUBLANE, LANE),
                                       lambda c, k: (c, 0, 0, 0)),
            ),
            compiler_params=pltpu.CompilerParams(
                # TODO(synk): on v7x verify both TensorCores run (xprof); if not,
                # switch the leading axis to pltpu.CORE_PARALLEL.
                dimension_semantics=("parallel", "arbitrary"),
                vmem_limit_bytes=vmem_limit),
        )(xb, tb)

        sums = jnp.sum(partials, axis=(0, 2, 3))      # tiny (3,) cross-lane combine
        inter, sum_xt, focal_sum = sums[0], sums[1], sums[2]

        if body_elems != n:
            ti, ts, tf = _elementwise_stats(x[body_elems:], t[body_elems:],
                                            alpha, gamma)
            inter = inter + ti
            sum_xt = sum_xt + ts
            focal_sum = focal_sum + tf

    dice_loss = 1.0 - (2.0 * inter + smooth) / (sum_xt + smooth)
    return focal_sum / jnp.float32(n) + dice_weight * dice_loss


def _reference(inputs, targets, *, dice_weight, alpha=0.25, gamma=2.0,
               smooth=1e-5):
    """Pure-JAX mirror of the PyTorch module's forward."""
    x = inputs.reshape(-1).astype(jnp.float32)
    t = targets.reshape(-1).astype(jnp.float32)
    inter = jnp.sum(x * t)
    dice_loss = 1.0 - (2.0 * inter + smooth) / (jnp.sum(x) + jnp.sum(t) + smooth)
    log_x = jnp.maximum(jnp.log(x), -100.0)
    log_1mx = jnp.maximum(jnp.log(1.0 - x), -100.0)
    bce = -(t * log_x + (1.0 - t) * log_1mx)
    p = jnp.exp(-bce)
    a = jnp.where(t == 1.0, alpha, 1.0 - alpha)
    loss = a * (1.0 - p) ** gamma * bce
    return jnp.mean(loss) + dice_weight * dice_loss


if __name__ == "__main__":
    key = jax.random.PRNGKey(0)
    k1, k2, k3, k4, k5, k6 = jax.random.split(key, 6)
    dice_weight = 0.5

    # 1) Primary example: NCHW probabilities (post-sigmoid) + binary masks.
    shape = (2, 4, 16, 16)
    inputs = jax.nn.sigmoid(jax.random.normal(k1, shape, dtype=jnp.float32))
    targets = (jax.random.uniform(k2, shape) > 0.5).astype(jnp.float32)
    out = jax.block_until_ready(
        focal_dice_bce_loss(inputs, targets, dice_weight=dice_weight))
    ref = _reference(inputs, targets, dice_weight=dice_weight)
    assert jnp.allclose(out, ref, rtol=1e-5, atol=1e-6), (out, ref)

    # 2) Ragged shape: exercises the aligned-body + JAX-tail split (no padding).
    shape2 = (3, 5, 37, 41)
    inputs2 = jax.nn.sigmoid(jax.random.normal(k3, shape2, dtype=jnp.float32))
    targets2 = (jax.random.uniform(k4, shape2) > 0.5).astype(jnp.float32)
    out2 = jax.block_until_ready(
        focal_dice_bce_loss(inputs2, targets2, dice_weight=dice_weight))
    ref2 = _reference(inputs2, targets2, dice_weight=dice_weight)
    assert jnp.allclose(out2, ref2, rtol=1e-5, atol=1e-6), (out2, ref2)

    # 3) Multi-tile shape with a partial last tile: exercises accumulation across
    #    grid steps, the chunked fori_loop, and the pl.when-gated tail mask.
    shape3 = (1, 2, 520, 512)
    inputs3 = jax.nn.sigmoid(jax.random.normal(k5, shape3, dtype=jnp.float32))
    targets3 = (jax.random.uniform(k6, shape3) > 0.5).astype(jnp.float32)
    out3 = jax.block_until_ready(
        focal_dice_bce_loss(inputs3, targets3, dice_weight=dice_weight))
    ref3 = _reference(inputs3, targets3, dice_weight=dice_weight)
    assert jnp.allclose(out3, ref3, rtol=1e-4, atol=1e-5), (out3, ref3)

    print("KERNEL_OK")
</pallas_src>

<mosaic_0001>
module attributes {stable_mosaic.version = 11 : i64} {
  func.func @_focal_dice_bce_kernel(%arg0: i32, %arg1: i32, %arg2: memref<16x128xf32, #tpu.memory_space<vmem>>, %arg3: memref<16x128xf32, #tpu.memory_space<vmem>>, %arg4: memref<1x3x8x128xf32, #tpu.memory_space<vmem>>) attributes {dimension_semantics = [#tpu.dimension_semantics<parallel>, #tpu.dimension_semantics<arbitrary>], iteration_bounds = array<i64: 1, 1>, scalar_prefetch = 0 : i64, scratch_operands = 0 : i64, tpu.core_type = #tpu.core_type<tc>, window_params = [{transform_indices = @transform_0, window_bounds = array<i64: 16, 128>}, {transform_indices = @transform_1, window_bounds = array<i64: 16, 128>}, {transform_indices = @transform_2, window_bounds = array<i64: 1, 3, 8, 128>}]} {
    %c0_i32 = arith.constant 0 : i32
    %0 = arith.cmpi eq, %arg1, %c0_i32 : i32
    %1 = arith.extui %0 : i1 to i32
    %c0_i32_0 = arith.constant 0 : i32
    %2 = arith.cmpi ne, %1, %c0_i32_0 : i32
    scf.if %2 {
      %cst_35 = arith.constant 0.000000e+00 : f32
      %49 = vector.broadcast %cst_35 : f32 to vector<1x3x8x128xf32>
      %c0_36 = arith.constant 0 : index
      %c0_37 = arith.constant 0 : index
      %c0_38 = arith.constant 0 : index
      %c0_39 = arith.constant 0 : index
      %50 = vector.load %arg4[%c0_36, %c0_37, %c0_38, %c0_39] : memref<1x3x8x128xf32, #tpu.memory_space<vmem>>, vector<1x3x8x128xf32>
      tpu.vector_store %arg4[%c0_36, %c0_37, %c0_38, %c0_39], %49 {strides = array<i32>} : memref<1x3x8x128xf32, #tpu.memory_space<vmem>>, vector<1x3x8x128xf32>,
    } else {
    }
    %c0 = arith.constant 0 : index
    %c0_1 = arith.constant 0 : index
    %3 = vector.load %arg2[%c0, %c0_1] : memref<16x128xf32, #tpu.memory_space<vmem>>, vector<16x128xf32>
    %c0_2 = arith.constant 0 : index
    %c0_3 = arith.constant 0 : index
    %4 = vector.load %arg3[%c0_2, %c0_3] : memref<16x128xf32, #tpu.memory_space<vmem>>, vector<16x128xf32>
    %cst = arith.constant 1.000000e+00 : f32
    %5 = vector.broadcast %cst : f32 to vector<16x128xf32>
    %6 = arith.cmpf oeq, %4, %5 : vector<16x128xf32>
    %cst_4 = arith.constant 1.000000e+00 : f32
    %7 = vector.broadcast %cst_4 : f32 to vector<16x128xf32>
    %8 = arith.subf %7, %3 : vector<16x128xf32>
    %9 = arith.select %6, %3, %8 : vector<16x128xi1>, vector<16x128xf32>
    %10 = math.log %9 : vector<16x128xf32>
    %cst_5 = arith.constant -1.000000e+02 : f32
    %11 = vector.broadcast %cst_5 : f32 to vector<16x128xf32>
    %12 = arith.maximumf %10, %11 : vector<16x128xf32>
    %cst_6 = arith.constant 0.000000e+00 : f32
    %13 = vector.broadcast %cst_6 : f32 to vector<16x128xf32>
    %14 = arith.subf %13, %12 : vector<16x128xf32>
    %cst_7 = arith.constant 1.000000e+00 : f32
    %15 = vector.broadcast %cst_7 : f32 to vector<16x128xf32>
    %16 = arith.subf %15, %9 : vector<16x128xf32>
    %17 = arith.mulf %16, %16 : vector<16x128xf32>
    %cst_8 = arith.constant 2.500000e-01 : f32
    %cst_9 = arith.constant 7.500000e-01 : f32
    %18 = vector.broadcast %cst_8 : f32 to vector<16x128xf32>
    %19 = vector.broadcast %cst_9 : f32 to vector<16x128xf32>
    %20 = arith.select %6, %18, %19 : vector<16x128xi1>, vector<16x128xf32>
    %21 = arith.mulf %20, %17 : vector<16x128xf32>
    %22 = arith.mulf %21, %14 : vector<16x128xf32>
    %23 = arith.mulf %3, %4 : vector<16x128xf32>
    %24 = arith.addf %3, %4 : vector<16x128xf32>
    %c0_10 = arith.constant 0 : index
    %c0_11 = arith.constant 0 : index
    %c0_12 = arith.constant 0 : index
    %c0_13 = arith.constant 0 : index
    %25 = vector.load %arg4[%c0_10, %c0_11, %c0_12, %c0_13] : memref<1x3x8x128xf32, #tpu.memory_space<vmem>>, vector<1x1x8x128xf32>
    %26 = vector.shape_cast %25 : vector<1x1x8x128xf32> to vector<8x128xf32>
    %27 = vector.shape_cast %23 : vector<16x128xf32> to vector<2x8x128xf32>
    %cst_14 = arith.constant dense<0.000000e+00> : vector<8x128xf32>
    %28 = vector.multi_reduction <add>, %27, %cst_14 [0] : vector<2x8x128xf32> to vector<8x128xf32>
    %29 = arith.addf %26, %28 : vector<8x128xf32>
    %c0_15 = arith.constant 0 : index
    %c0_16 = arith.constant 0 : index
    %c0_17 = arith.constant 0 : index
    %c0_18 = arith.constant 0 : index
    %30 = vector.load %arg4[%c0_15, %c0_16, %c0_17, %c0_18] : memref<1x3x8x128xf32, #tpu.memory_space<vmem>>, vector<1x1x8x128xf32>
    %31 = vector.shape_cast %30 : vector<1x1x8x128xf32> to vector<8x128xf32>
    %32 = vector.shape_cast %29 : vector<8x128xf32> to vector<1x1x8x128xf32>
    tpu.vector_store %arg4[%c0_15, %c0_16, %c0_17, %c0_18], %32 {strides = array<i32>} : memref<1x3x8x128xf32, #tpu.memory_space<vmem>>, vector<1x1x8x128xf32>,
    %c0_19 = arith.constant 0 : index
    %c1 = arith.constant 1 : index
    %c0_20 = arith.constant 0 : index
    %c0_21 = arith.constant 0 : index
    %33 = vector.load %arg4[%c0_19, %c1, %c0_20, %c0_21] : memref<1x3x8x128xf32, #tpu.memory_space<vmem>>, vector<1x1x8x128xf32>
    %34 = vector.shape_cast %33 : vector<1x1x8x128xf32> to vector<8x128xf32>
    %35 = vector.shape_cast %24 : vector<16x128xf32> to vector<2x8x128xf32>
    %cst_22 = arith.constant dense<0.000000e+00> : vector<8x128xf32>
    %36 = vector.multi_reduction <add>, %35, %cst_22 [0] : vector<2x8x128xf32> to vector<8x128xf32>
    %37 = arith.addf %34, %36 : vector<8x128xf32>
    %c0_23 = arith.constant 0 : index
    %c1_24 = arith.constant 1 : index
    %c0_25 = arith.constant 0 : index
    %c0_26 = arith.constant 0 : index
    %38 = vector.load %arg4[%c0_23, %c1_24, %c0_25, %c0_26] : memref<1x3x8x128xf32, #tpu.memory_space<vmem>>, vector<1x1x8x128xf32>
    %39 = vector.shape_cast %38 : vector<1x1x8x128xf32> to vector<8x128xf32>
    %40 = vector.shape_cast %37 : vector<8x128xf32> to vector<1x1x8x128xf32>
    tpu.vector_store %arg4[%c0_23, %c1_24, %c0_25, %c0_26], %40 {strides = array<i32>} : memref<1x3x8x128xf32, #tpu.memory_space<vmem>>, vector<1x1x8x128xf32>,
    %c0_27 = arith.constant 0 : index
    %c2 = arith.constant 2 : index
    %c0_28 = arith.constant 0 : index
    %c0_29 = arith.constant 0 : index
    %41 = vector.load %arg4[%c0_27, %c2, %c0_28, %c0_29] : memref<1x3x8x128xf32, #tpu.memory_space<vmem>>, vector<1x1x8x128xf32>
    %42 = vector.shape_cast %41 : vector<1x1x8x128xf32> to vector<8x128xf32>
    %43 = vector.shape_cast %22 : vector<16x128xf32> to vector<2x8x128xf32>
    %cst_30 = arith.constant dense<0.000000e+00> : vector<8x128xf32>
    %44 = vector.multi_reduction <add>, %43, %cst_30 [0] : vector<2x8x128xf32> to vector<8x128xf32>
    %45 = arith.addf %42, %44 : vector<8x128xf32>
    %c0_31 = arith.constant 0 : index
    %c2_32 = arith.constant 2 : index
    %c0_33 = arith.constant 0 : index
    %c0_34 = arith.constant 0 : index
    %46 = vector.load %arg4[%c0_31, %c2_32, %c0_33, %c0_34] : memref<1x3x8x128xf32, #tpu.memory_space<vmem>>, vector<1x1x8x128xf32>
    %47 = vector.shape_cast %46 : vector<1x1x8x128xf32> to vector<8x128xf32>
    %48 = vector.shape_cast %45 : vector<8x128xf32> to vector<1x1x8x128xf32>
    tpu.vector_store %arg4[%c0_31, %c2_32, %c0_33, %c0_34], %48 {strides = array<i32>} : memref<1x3x8x128xf32, #tpu.memory_space<vmem>>, vector<1x1x8x128xf32>,
    return
  }
  func.func @transform_0(%arg0: i32, %arg1: i32) -> (i32, i32) {
    %c1_i32 = arith.constant 1 : i32
    %0 = arith.muli %arg0, %c1_i32 : i32
    %1 = arith.addi %0, %arg1 : i32
    %c0_i32 = arith.constant 0 : i32
    %2 = arith.minsi %1, %c0_i32 : i32
    %c0_i32_0 = arith.constant 0 : i32
    %c0_i32_1 = arith.constant 0 : i32
    return %2, %c0_i32_0 : i32, i32
  }
  func.func @transform_1(%arg0: i32, %arg1: i32) -> (i32, i32) {
    %c1_i32 = arith.constant 1 : i32
    %0 = arith.muli %arg0, %c1_i32 : i32
    %1 = arith.addi %0, %arg1 : i32
    %c0_i32 = arith.constant 0 : i32
    %2 = arith.minsi %1, %c0_i32 : i32
    %c0_i32_0 = arith.constant 0 : i32
    %c0_i32_1 = arith.constant 0 : i32
    return %2, %c0_i32_0 : i32, i32
  }
  func.func @transform_2(%arg0: i32, %arg1: i32) -> (i32, i32, i32, i32) {
    %c0_i32 = arith.constant 0 : i32
    %c0_i32_0 = arith.constant 0 : i32
    %c0_i32_1 = arith.constant 0 : i32
    %c0_i32_2 = arith.constant 0 : i32
    return %arg0, %c0_i32, %c0_i32_0, %c0_i32_1 : i32, i32, i32, i32
  }
}

</mosaic_0001>

<llo_original>
// kernel: tpu_custom_call.1
$region0: #{tpu_custom_call.1}
  #allocation0 [shape = 'u32[]', space=smem, size = 0x4, offset = 0x4, fixed_abs, tag = 'smem constant byte address 0x4 - core index']
  #allocation1 [shape = 'u32[72,128]{1,0:T(1,128)}', space=vmem, size = 0x9000, scoped, tag = 'internal scratch']
  %s0 = inlined_call_operand.hbm [shape: f32[16,128], index: 0, kind: input, shape index: {}]
  %s1 = inlined_call_operand.hbm [shape: f32[16,128], index: 1, kind: input, shape index: {}]
  %s2 = inlined_call_operand.hbm [shape: f32[1,3,8,128], index: 2, kind: output, shape index: {}]
  %s3 = sld [smem:[#allocation0]]
  $region30: #{tpu_custom_call.1} parent=0
    _
  %s5 = ssub.s32 1, %s3
  %s6 = scalar_select 0, %s5, %s3
  $region1: #{tpu_custom_call.1} parent=0
    #allocation2 [shape = 'u8[8192]{0}', space=vmem, size = 0x2000, scoped, tag = 'input window, operand 0, single buffered']
    #allocation3 [shape = 's32[1]{0}', space=sflag, size = 0x4, scoped, tag = 'scoped memory for tpu_custom_call.1']
    #allocation4 [shape = 's32[1]{0}', space=sflag, size = 0x4, scoped, tag = 'scoped memory for tpu_custom_call.1']
    #allocation5 [shape = 'u8[8192]{0}', space=vmem, size = 0x2000, scoped, tag = 'input window, operand 1, single buffered']
    #allocation6 [shape = 's32[1]{0}', space=sflag, size = 0x4, scoped, tag = 'scoped memory for tpu_custom_call.1']
    #allocation7 [shape = 'u8[12288]{0}', space=vmem, size = 0x3000, scoped, tag = 'output window, operand 0, single buffered']
    %7 = vsyncpa [#allocation3], 0
    %8 = vsyncpa [#allocation6], 0
    %9 = vsyncpa [#allocation4], 0
    // Predicated region
    $region2: #{tpu_custom_call.1} parent=1 // pred_check
      _
    $region3: #{tpu_custom_call.1} parent=1 // pred_check_branch
      %11 = sbr.rel (0) target = $region5
    $region4: #{tpu_custom_call.1} parent=1 // pred_region
      %s12 = sadd.s32 0, 0
      %p13 = scmp.lt.s32.totalorder %s12, 0
      %s14 = scalar_select %p13, %s12, 0
      %s15 = smul.u32 2, %s14
      %17 = vsyncadd [#allocation3], 0
      %s18 = smul.addr %s15, 8
      %s19 = scalar_lea.hbm %s0, %s18
      %s20 = sshll.u32 %s19, 4
      %s21 = int_to_ptr.hbm [resolvable:$true] %s20
      %s22 = sshll.u32 [#allocation2], 4
      %s23 = int_to_ptr.vmem [resolvable:$true] %s22
      %28 = dma.hbm_to_vmem [thread:$0]  %s21, 256, %s23, [#allocation3], 128, 128, 8
    $region5: #{tpu_custom_call.1} parent=1 // pred_fallthru
      _
    // Predicated region
    $region6: #{tpu_custom_call.1} parent=1 // pred_check
      _
    $region7: #{tpu_custom_call.1} parent=1 // pred_check_branch
      %30 = sbr.rel (0) target = $region9
    $region8: #{tpu_custom_call.1} parent=1 // pred_region
      %s31 = sadd.s32 0, 0
      %p32 = scmp.lt.s32.totalorder %s31, 0
      %s33 = scalar_select %p32, %s31, 0
      %s34 = smul.u32 2, %s33
      %36 = vsyncadd [#allocation6], 0
      %s37 = smul.addr %s34, 8
      %s38 = scalar_lea.hbm %s1, %s37
      %s39 = sshll.u32 %s38, 4
      %s40 = int_to_ptr.hbm [resolvable:$true] %s39
      %s41 = sshll.u32 [#allocation5], 4
      %s42 = int_to_ptr.vmem [resolvable:$true] %s41
      %47 = dma.hbm_to_vmem [thread:$0]  %s40, 256, %s42, [#allocation6], 128, 128, 8
    $region9: #{tpu_custom_call.1} parent=1 // pred_fallthru
      _
    // Predicated region
    $region10: #{tpu_custom_call.1} parent=1 // pred_check
      _
    $region11: #{tpu_custom_call.1} parent=1 // pred_check_branch
      %49 = sbr.rel (0) target = $region13
    $region12: #{tpu_custom_call.1} parent=1 // pred_region
      %51 = dma.done [#allocation3], 256
    $region13: #{tpu_custom_call.1} parent=1 // pred_fallthru
      _
    // Predicated region
    $region14: #{tpu_custom_call.1} parent=1 // pred_check
      _
    $region15: #{tpu_custom_call.1} parent=1 // pred_check_branch
      %53 = sbr.rel (0) target = $region17
    $region16: #{tpu_custom_call.1} parent=1 // pred_region
      %55 = dma.done [#allocation6], 256
    $region17: #{tpu_custom_call.1} parent=1 // pred_fallthru
      _
    %s56 = sadd.s32 0, 0
    %p57 = scmp.lt.s32.totalorder %s56, 0
    %s58 = scalar_select %p57, %s56, 0
    %s59 = smul.u32 2, %s58
    %s60 = sadd.s32 0, 0
    %p61 = scmp.lt.s32.totalorder %s60, 0
    %s62 = scalar_select %p61, %s60, 0
    %s63 = smul.u32 2, %s62
    %p64 = scmp.eq.s32.totalorder 0, 0
    // Predicated region
    $region18: #{tpu_custom_call.1} parent=1 // pred_check
      %p65 = pneg %p64
    $region19: #{tpu_custom_call.1} parent=1 // pred_check_branch
      %67 = sbr.rel (%p65) target = $region21
    $region20: #{tpu_custom_call.1} parent=1 // pred_region
      %68 = vst [vmem:[#allocation7] sm:$0xff] 0.0
      %69 = vst [vmem:[#allocation7 + $0x8] sm:$0xff] 0.0
      %70 = vst [vmem:[#allocation7 + $0x10] sm:$0xff] 0.0
    $region21: #{tpu_custom_call.1} parent=1 // pred_fallthru
      _
    %v71 = vld [vmem:[#allocation2] sm:$0xff]
    %v72 = vld [vmem:[#allocation2 + $0x8] sm:$0xff]
    %v73 = vld [vmem:[#allocation5] sm:$0xff]
    %v74 = vld [vmem:[#allocation5 + $0x8] sm:$0xff]
    %vm75 = vcmp.eq.f32.partialorder %v73, 1.0
    %vm76 = vcmp.eq.f32.partialorder %v74, 1.0
    %v77 = vsub.f32 1.0, %v71
    %v78 = vsub.f32 1.0, %v72
    %v79 = vsel %vm75, %v71, %v77
    %v80 = vsel %vm76, %v72, %v78
    %v81 = vlog2.pop %v79
    %v82 = vmul.f32 %v81, 0.6931472
    %v83 = vlog2.pop %v80
    %v84 = vmul.f32 %v83, 0.6931472
    %v85 = vmax.f32 %v82, -100.0
    %v86 = vmax.f32 %v84, -100.0
    %v87 = vsub.f32 0.0, %v85
    %v88 = vsub.f32 0.0, %v86
    %v89 = vsub.f32 1.0, %v79
    %v90 = vsub.f32 1.0, %v80
    %v91 = vmul.f32 %v89, %v89
    %v92 = vmul.f32 %v90, %v90
    %v93 = vsel %vm75, 0.25, 0.75
    %v94 = vsel %vm76, 0.25, 0.75
    %v95 = vmul.f32 %v93, %v91
    %v96 = vmul.f32 %v94, %v92
    %v97 = vmul.f32 %v95, %v87
    %v98 = vmul.f32 %v96, %v88
    %v99 = vmul.f32 %v71, %v73
    %v100 = vmul.f32 %v72, %v74
    %v101 = vadd.f32 %v71, %v73
    %v102 = vadd.f32 %v72, %v74
    %v103 = vld [vmem:[#allocation7] sm:$0xff]
    %v104 = vadd.f32 %v99, %v100
    %v105 = vadd.f32 %v103, %v104
    %106 = vst [vmem:[#allocation7] sm:$0xff] %v105
    %s107 = scalar_lea.vmem [#allocation7], 8
    %v108 = vld [vmem:[%s107] sm:$0xff]
    %v109 = vadd.f32 %v101, %v102
    %v110 = vadd.f32 %v108, %v109
    %111 = vst [vmem:[%s107] sm:$0xff] %v110
    %s112 = scalar_lea.vmem [#allocation7], 16
    %v113 = vld [vmem:[%s112] sm:$0xff]
    %v114 = vadd.f32 %v97, %v98
    %v115 = vadd.f32 %v113, %v114
    %116 = vst [vmem:[%s112] sm:$0xff] %v115
    // Predicated region
    $region22: #{tpu_custom_call.1} parent=1 // pred_check
      _
    $region23: #{tpu_custom_call.1} parent=1 // pred_check_branch
      %118 = sbr.rel (0) target = $region25
    $region24: #{tpu_custom_call.1} parent=1 // pred_region
      %120 = vsyncadd [#allocation4], 0
      %s121 = sshll.u32 [#allocation7], 4
      %s122 = int_to_ptr.vmem [resolvable:$true] %s121
      %s123 = sshll.u32 %s2, 4
      %s124 = int_to_ptr.hbm [resolvable:$true] %s123
      %129 = dma.vmem_to_hbm [thread:$0]  %s122, 384, %s124, [#allocation4], 128, 128, 8
    $region25: #{tpu_custom_call.1} parent=1 // pred_fallthru
      _
    // Predicated region
    $region26: #{tpu_custom_call.1} parent=1 // pred_check
      _
    $region27: #{tpu_custom_call.1} parent=1 // pred_check_branch
      %131 = sbr.rel (0) target = $region29
    $region28: #{tpu_custom_call.1} parent=1 // pred_region
      %133 = dma.done [#allocation4], 384
    $region29: #{tpu_custom_call.1} parent=1 // pred_fallthru
      _
    %134 = vsyncpa [#allocation3], 1
    %135 = vsyncpa [#allocation6], 1
    %136 = vsyncpa [#allocation4], 1

</llo_original>
